<compile_context>
chip_gen: v7x
topology: tpu7x:2x2x1
jax: 0.10.0
libtpu: 0.0.40
codegen_flags: <defaults>
</compile_context>

<pallas_src>
import functools

import numpy as np
import jax
import jax.numpy as jnp
from jax.experimental import pallas as pl
from jax.experimental.pallas import tpu as pltpu


# ----------------------------- tree definition ------------------------------

LEVELORDER = ["R", "I0", "I1", "L0", "L1", "L2", "L3"]
TREE_CHILDREN = {"R": ["I0", "I1"], "I0": ["L0", "L1"], "I1": ["L2", "L3"]}
LEAVES = ["L0", "L1", "L2", "L3"]

NODE_MIN_DIM = 4
NODE_DIM_CONST = 8                        # node_dim_func='const', param=8
NODE_OUT = max(NODE_MIN_DIM, NODE_DIM_CONST)    # 8 for every node
OUTPUT_DIM = 3
GATE_VALUE = 0.5                          # deterministic gate value
BN_EPS = 1e-5

NUM_LEAVES = len(LEAVES)
LEAF_SLAB = NUM_LEAVES * NODE_OUT         # 32  (L0|L1|L2|L3 rows, feature-major)
INT_SLAB = 2 * NODE_OUT                   # 16  (I0|I1 rows, feature-major)
OUTPUT_IN_DIM = NODE_OUT                  # output_nodes == [R]

LANE = 128

# ----------------- single packed weight slab layout (128 x 128 f32) ----------
SLAB_ROWS, SLAB_COLS = 128, 128
BIAS_COL, GAMMA_COL, BETA_COL = 32, 33, 34
ROW_LEAF = 0        # rows   0: 64, cols 0:4   [mlp block-diag | lin block-diag]
ROW_WM_INT = 64     # rows  64: 80, cols 0:32
ROW_WL_INT = 80     # rows  80: 96, cols 0:32
ROW_WM_ROOT = 96    # rows  96:104, cols 0:16  (+ gamma/beta columns)
ROW_WL_ROOT = 104   # rows 104:112, cols 0:16
ROW_W_OUT = 112     # rows 112:115, cols 0:8
ROW_EYE = 120       # rows 120:128, cols 0:8   identity used for the BN weight fold


def _node_dims():
    """Reproduce _build_network dim bookkeeping (reversed levelorder)."""
    dims = {}
    for name in reversed(LEVELORDER):
        in_dim = 1 if name in LEAVES else sum(dims[c][1] for c in TREE_CHILDREN[name])
        dims[name] = (in_dim, NODE_OUT)
    return dims


NODE_DIMS = _node_dims()


# ------------------------------ fused Pallas kernel --------------------------

def fused_treenn_kernel(gate, n_valid, inv_n, tile_b,
                        x_ref, w_ref, out_ref, sum_ref, sumsq_ref):
    """Whole TreeNN forward, feature-major (batch on the 128-lane axis).

    grid = (2, num_batch_tiles), iterated phase-major:
      phase 0: run the tree on this batch tile and accumulate full-batch
               BatchNorm sum / sum-of-squares (padding lanes masked out).
      phase 1: re-run the (tiny) tree, fold the BN scale/shift into the output
               Linear and write the lane-dense (3, tile_b) predictions.
    """
    phase = pl.program_id(0)
    tile = pl.program_id(1)

    x = x_ref[...]                                                  # (4, tile_b)

    # Static views into the resident weight slab (one HBM->VMEM DMA, index (0,0)).
    w_leaf = w_ref[ROW_LEAF:ROW_LEAF + 2 * LEAF_SLAB, 0:NUM_LEAVES]           # (64, 4)
    b_leaf = w_ref[ROW_LEAF:ROW_LEAF + 2 * LEAF_SLAB, BIAS_COL:BIAS_COL + 1]  # (64, 1)
    wm_int = w_ref[ROW_WM_INT:ROW_WM_INT + INT_SLAB, 0:LEAF_SLAB]             # (16, 32)
    bm_int = w_ref[ROW_WM_INT:ROW_WM_INT + INT_SLAB, BIAS_COL:BIAS_COL + 1]
    wl_int = w_ref[ROW_WL_INT:ROW_WL_INT + INT_SLAB, 0:LEAF_SLAB]
    bl_int = w_ref[ROW_WL_INT:ROW_WL_INT + INT_SLAB, BIAS_COL:BIAS_COL + 1]
    wm_root = w_ref[ROW_WM_ROOT:ROW_WM_ROOT + NODE_OUT, 0:INT_SLAB]           # (8, 16)
    bm_root = w_ref[ROW_WM_ROOT:ROW_WM_ROOT + NODE_OUT, BIAS_COL:BIAS_COL + 1]
    wl_root = w_ref[ROW_WL_ROOT:ROW_WL_ROOT + NODE_OUT, 0:INT_SLAB]
    bl_root = w_ref[ROW_WL_ROOT:ROW_WL_ROOT + NODE_OUT, BIAS_COL:BIAS_COL + 1]

    # ---- leaf level: mlp + lin fused into ONE block-diagonal matmul ----------
    leaf = jnp.dot(w_leaf, x, preferred_element_type=jnp.float32) + b_leaf    # (64, tb)
    l_mlp = jnp.maximum(leaf[0:LEAF_SLAB, :], 0.0)
    l_lin = leaf[LEAF_SLAB:2 * LEAF_SLAB, :]
    l_g = l_lin + gate * (l_mlp - l_lin)                                      # (32, tb)

    # ---- internal level: I0 | I1 block-diagonal -------------------------------
    # mlp path consumes GATED children; linear path consumes UN-gated linear children.
    i_mlp = jnp.maximum(
        jnp.dot(wm_int, l_g, preferred_element_type=jnp.float32) + bm_int, 0.0)
    i_lin = jnp.dot(wl_int, l_lin, preferred_element_type=jnp.float32) + bl_int
    i_g = i_lin + gate * (i_mlp - i_lin)                                      # (16, tb)

    # ---- root ------------------------------------------------------------------
    r_mlp = jnp.maximum(
        jnp.dot(wm_root, i_g, preferred_element_type=jnp.float32) + bm_root, 0.0)
    r_lin = jnp.dot(wl_root, i_lin, preferred_element_type=jnp.float32) + bl_root
    r_g = r_lin + gate * (r_mlp - r_lin)                                      # (8, tb)

    @pl.when(jnp.logical_and(phase == 0, tile == 0))
    def _init_stats():
        sum_ref[...] = jnp.zeros_like(sum_ref)
        sumsq_ref[...] = jnp.zeros_like(sumsq_ref)

    @pl.when(phase == 0)
    def _accumulate_stats():
        # Exclude batch-padding lanes from the full-batch BatchNorm statistics.
        lane = jax.lax.broadcasted_iota(jnp.int32, r_g.shape, 1) + tile * tile_b
        rv = jnp.where(lane < n_valid, r_g, 0.0)
        sum_ref[...] += jnp.sum(rv, axis=1, keepdims=True)
        sumsq_ref[...] += jnp.sum(rv * r_g, axis=1, keepdims=True)

    @pl.when(phase == 1)
    def _normalize_and_project():
        gamma = w_ref[ROW_WM_ROOT:ROW_WM_ROOT + NODE_OUT, GAMMA_COL:GAMMA_COL + 1]
        beta = w_ref[ROW_WM_ROOT:ROW_WM_ROOT + NODE_OUT, BETA_COL:BETA_COL + 1]
        w_out = w_ref[ROW_W_OUT:ROW_W_OUT + OUTPUT_DIM, 0:OUTPUT_IN_DIM]      # (3, 8)
        b_out = w_ref[ROW_W_OUT:ROW_W_OUT + OUTPUT_DIM, BIAS_COL:BIAS_COL + 1]
        eye8 = w_ref[ROW_EYE:ROW_EYE + NODE_OUT, 0:NODE_OUT]                  # (8, 8)

        mean = sum_ref[...] * inv_n                         # (8, 1)
        var = sumsq_ref[...] * inv_n - mean * mean          # biased var (train-mode BN)
        s = gamma * jax.lax.rsqrt(var + BN_EPS)             # (8, 1), rsqrt on the EUP

        # Fold BN into the output Linear: out = (w_out @ diag(s)) @ r_g + const.
        # (diag(s) built from the stored identity avoids a sublane->lane transpose.)
        w_eff = jnp.dot(w_out, eye8 * s, preferred_element_type=jnp.float32)  # (3, 8)
        bias = jnp.dot(w_out, beta - mean * s,
                       preferred_element_type=jnp.float32) + b_out            # (3, 1)
        out_ref[...] = jnp.dot(w_eff, r_g,
                               preferred_element_type=jnp.float32) + bias     # (3, tb)


# --------------------------- parameter construction --------------------------

def kaiming_normal(key, out_dim, in_dim):
    # nn.init.kaiming_normal_ default: fan_in, gain=sqrt(2) -> std=sqrt(2/fan_in)
    std = (2.0 / in_dim) ** 0.5
    return std * jax.random.normal(key, (out_dim, in_dim), dtype=jnp.float32)


def init_params(key):
    """Per-node parameters in torch layout: W is (out_features, in_features)."""
    params = {"nodes": {}}
    for name in reversed(LEVELORDER):
        in_dim, out_dim = NODE_DIMS[name]
        key, km, kl = jax.random.split(key, 3)
        params["nodes"][name] = {
            "wm": kaiming_normal(km, out_dim, in_dim),
            "bm": jnp.zeros((out_dim,), jnp.float32),
            "wl": kaiming_normal(kl, out_dim, in_dim),
            "bl": jnp.zeros((out_dim,), jnp.float32),
        }
    key, kw = jax.random.split(key)
    params["output"] = {
        "gamma": jnp.ones((OUTPUT_IN_DIM,), jnp.float32),
        "beta": jnp.zeros((OUTPUT_IN_DIM,), jnp.float32),
        "w": kaiming_normal(kw, OUTPUT_DIM, OUTPUT_IN_DIM),
        "b": jnp.zeros((OUTPUT_DIM,), jnp.float32),
    }
    return params


def pack_params(params):
    """Pack EVERY weight/bias/BN parameter into ONE (128,128) f32 slab.

    Feature-major (out, in) orientation (no transposes needed from torch layout),
    sibling nodes block-diagonal, biases/gamma/beta stored as columns -> the whole
    network needs a single HBM->VMEM DMA and zero in-kernel concatenation.
    """
    nodes = params["nodes"]
    slab = np.zeros((SLAB_ROWS, SLAB_COLS), np.float32)

    # Leaf level: one (64, 4) matrix = fused [mlp rows 0:32 | lin rows 32:64] blockdiag.
    for j, leaf in enumerate(LEAVES):
        p = nodes[leaf]
        rm = ROW_LEAF + NODE_OUT * j
        rl = ROW_LEAF + LEAF_SLAB + NODE_OUT * j
        slab[rm:rm + NODE_OUT, j] = np.asarray(p["wm"][:, 0])
        slab[rl:rl + NODE_OUT, j] = np.asarray(p["wl"][:, 0])
        slab[rm:rm + NODE_OUT, BIAS_COL] = np.asarray(p["bm"])
        slab[rl:rl + NODE_OUT, BIAS_COL] = np.asarray(p["bl"])

    # Internal level: I0 | I1 block-diagonal (16, 32).
    for j, name in enumerate(["I0", "I1"]):
        p = nodes[name]
        r, c = NODE_OUT * j, INT_SLAB * j
        slab[ROW_WM_INT + r:ROW_WM_INT + r + NODE_OUT, c:c + INT_SLAB] = np.asarray(p["wm"])
        slab[ROW_WL_INT + r:ROW_WL_INT + r + NODE_OUT, c:c + INT_SLAB] = np.asarray(p["wl"])
        slab[ROW_WM_INT + r:ROW_WM_INT + r + NODE_OUT, BIAS_COL] = np.asarray(p["bm"])
        slab[ROW_WL_INT + r:ROW_WL_INT + r + NODE_OUT, BIAS_COL] = np.asarray(p["bl"])

    # Root node.
    pr = nodes["R"]
    slab[ROW_WM_ROOT:ROW_WM_ROOT + NODE_OUT, 0:INT_SLAB] = np.asarray(pr["wm"])
    slab[ROW_WL_ROOT:ROW_WL_ROOT + NODE_OUT, 0:INT_SLAB] = np.asarray(pr["wl"])
    slab[ROW_WM_ROOT:ROW_WM_ROOT + NODE_OUT, BIAS_COL] = np.asarray(pr["bm"])
    slab[ROW_WL_ROOT:ROW_WL_ROOT + NODE_OUT, BIAS_COL] = np.asarray(pr["bl"])

    # Output layer (BN affine + Linear) and an 8x8 identity for the BN weight fold.
    po = params["output"]
    slab[ROW_WM_ROOT:ROW_WM_ROOT + NODE_OUT, GAMMA_COL] = np.asarray(po["gamma"])
    slab[ROW_WM_ROOT:ROW_WM_ROOT + NODE_OUT, BETA_COL] = np.asarray(po["beta"])
    slab[ROW_W_OUT:ROW_W_OUT + OUTPUT_DIM, 0:OUTPUT_IN_DIM] = np.asarray(po["w"])
    slab[ROW_W_OUT:ROW_W_OUT + OUTPUT_DIM, BIAS_COL] = np.asarray(po["b"])
    slab[ROW_EYE:ROW_EYE + NODE_OUT, 0:NODE_OUT] = np.eye(NODE_OUT, dtype=np.float32)

    return jnp.asarray(slab)


# -------------------------------- full forward --------------------------------

def treenn_forward(x, weight_slab, *, tile_b=1024):
    """TreeNN forward. Returns (preds (B,3), total_l0_reg)."""
    batch = x.shape[0]

    # Feature-major: batch on the 128-lane axis -> lane-dense matmuls & stores.
    x_fm = x.astype(jnp.float32).T                          # (4, B)

    tile_b = min(int(tile_b), pl.cdiv(batch, LANE) * LANE)
    tile_b = max(LANE, (tile_b // LANE) * LANE)
    b_pad = pl.cdiv(batch, tile_b) * tile_b
    if b_pad != batch:
        x_fm = jnp.pad(x_fm, ((0, 0), (0, b_pad - batch)))
    num_tiles = b_pad // tile_b

    kernel = functools.partial(fused_treenn_kernel, float(GATE_VALUE),
                               int(batch), float(1.0 / batch), int(tile_b))

    macs_per_col = (2 * LEAF_SLAB * NUM_LEAVES + 2 * INT_SLAB * LEAF_SLAB
                    + 2 * NODE_OUT * INT_SLAB + OUTPUT_DIM * OUTPUT_IN_DIM)
    cost = pl.CostEstimate(
        flops=int(2 * 2 * macs_per_col * b_pad),            # tree runs in both phases
        transcendentals=int(NODE_OUT * num_tiles),
        bytes_accessed=int(4 * (2 * x_fm.size + SLAB_ROWS * SLAB_COLS
                                + OUTPUT_DIM * b_pad)))

    out_fm = pl.pallas_call(
        kernel,
        out_shape=jax.ShapeDtypeStruct((OUTPUT_DIM, b_pad), jnp.float32),
        grid_spec=pltpu.PrefetchScalarGridSpec(
            num_scalar_prefetch=0,
            grid=(2, num_tiles),                            # (BN phase, batch tile)
            in_specs=[
                pl.BlockSpec((NUM_LEAVES, tile_b), lambda p, i: (0, i)),   # x tiles
                pl.BlockSpec((SLAB_ROWS, SLAB_COLS), lambda p, i: (0, 0)),  # resident slab
            ],
            out_specs=pl.BlockSpec((OUTPUT_DIM, tile_b), lambda p, i: (0, i)),
            scratch_shapes=[pltpu.VMEM((NODE_OUT, 1), jnp.float32),   # BN sum
                            pltpu.VMEM((NODE_OUT, 1), jnp.float32)],  # BN sum of squares
        ),
        compiler_params=pltpu.CompilerParams(
            # Both axes 'arbitrary': exact full-batch BatchNorm shares one stats
            # accumulator across every batch tile, so this single call cannot shard
            # the batch axis across v7x's two TensorCores without splitting BN out.
            dimension_semantics=("arbitrary", "arbitrary"),
            vmem_limit_bytes=32 * 1024 * 1024,
        ),
        cost_estimate=cost,
    )(x_fm, weight_slab)

    preds = out_fm[:, :batch].T                             # (B, 3)
    total_l0_reg = jnp.float32(0.0)                         # DeterministicGate -> 0
    return preds, total_l0_reg


# ------------------------------ pure-JAX reference ----------------------------

def reference_forward(x, params):
    """Straightforward per-node reference mirroring the PyTorch forward."""
    g = GATE_VALUE
    nodes = params["nodes"]

    def tree_node(name, x_mlp, x_lin):
        p = nodes[name]
        mlp = jax.nn.relu(x_mlp @ p["wm"].T + p["bm"])
        lin = x_lin @ p["wl"].T + p["bl"]
        return g * mlp + (1.0 - g) * lin, lin

    outs = {}
    for j, leaf in enumerate(LEAVES):
        xj = x[:, j:j + 1]
        outs[leaf] = tree_node(leaf, xj, xj)
    for name in ["I0", "I1", "R"]:
        cm = jnp.concatenate([outs[c][0] for c in TREE_CHILDREN[name]], axis=1)
        cl = jnp.concatenate([outs[c][1] for c in TREE_CHILDREN[name]], axis=1)
        outs[name] = tree_node(name, cm, cl)

    emb = outs["R"][0]
    po = params["output"]
    mean = jnp.mean(emb, axis=0, keepdims=True)
    var = jnp.mean(jnp.square(emb - mean), axis=0, keepdims=True)
    y = (emb - mean) * jax.lax.rsqrt(var + BN_EPS) * po["gamma"] + po["beta"]
    return y @ po["w"].T + po["b"]


# ------------------------------------ main ------------------------------------

if __name__ == "__main__":
    key = jax.random.PRNGKey(0)
    key, kx, kp = jax.random.split(key, 3)

    # Deliberately NOT a multiple of the 128-lane tile: exercises batch padding,
    # the masked full-batch BN statistics, and the multi-tile two-pass grid.
    batch = 200
    x = jax.random.normal(kx, (batch, NUM_LEAVES), dtype=jnp.float32)

    params = init_params(kp)
    weight_slab = pack_params(params)       # one-time packing, outside the hot path

    fwd = jax.jit(functools.partial(treenn_forward, tile_b=128))
    preds, l0 = fwd(x, weight_slab)
    jax.block_until_ready(preds)

    assert preds.shape == (batch, OUTPUT_DIM), preds.shape
    assert preds.dtype == jnp.float32
    assert bool(jnp.all(jnp.isfinite(preds)))

    # Loose tolerance: XLA's default f32 matmul pass count may differ from the MXU
    # pass count Mosaic picks; real packing/indexing bugs show up as O(1) errors.
    ref = reference_forward(x, params)
    max_err = float(jnp.max(jnp.abs(preds - ref)))
    assert max_err < 1e-1, f"kernel vs reference mismatch: {max_err}"

    print("KERNEL_OK")
</pallas_src>

<mosaic_0001>
module attributes {stable_mosaic.version = 11 : i64} {
  func.func @fused_treenn_kernel(%arg0: i32, %arg1: i32, %arg2: memref<4x128xf32, #tpu.memory_space<vmem>>, %arg3: memref<128x128xf32, #tpu.memory_space<vmem>>, %arg4: memref<3x128xf32, #tpu.memory_space<vmem>>, %arg5: memref<8x1xf32, #tpu.memory_space<vmem>>, %arg6: memref<8x1xf32, #tpu.memory_space<vmem>>) attributes {dimension_semantics = [#tpu.dimension_semantics<arbitrary>, #tpu.dimension_semantics<arbitrary>], iteration_bounds = array<i64: 2, 2>, scalar_prefetch = 0 : i64, scratch_operands = 2 : i64, tpu.core_type = #tpu.core_type<tc>, window_params = [{transform_indices = @transform_0, window_bounds = array<i64: 4, 128>}, {pipeline_mode = #tpu.pipeline_mode<synchronous>, transform_indices = @transform_1, window_bounds = array<i64: 128, 128>}, {transform_indices = @transform_2, window_bounds = array<i64: 3, 128>}]} {
    %c0 = arith.constant 0 : index
    %c0_0 = arith.constant 0 : index
    %0 = vector.load %arg2[%c0, %c0_0] : memref<4x128xf32, #tpu.memory_space<vmem>>, vector<4x128xf32>
    %c0_1 = arith.constant 0 : index
    %c0_2 = arith.constant 0 : index
    %1 = vector.load %arg3[%c0_1, %c0_2] : memref<128x128xf32, #tpu.memory_space<vmem>>, vector<64x4xf32>
    %c0_3 = arith.constant 0 : index
    %c32 = arith.constant 32 : index
    %2 = vector.load %arg3[%c0_3, %c32] : memref<128x128xf32, #tpu.memory_space<vmem>>, vector<64x1xf32>
    %c64 = arith.constant 64 : index
    %c0_4 = arith.constant 0 : index
    %3 = vector.load %arg3[%c64, %c0_4] : memref<128x128xf32, #tpu.memory_space<vmem>>, vector<16x32xf32>
    %c64_5 = arith.constant 64 : index
    %c32_6 = arith.constant 32 : index
    %4 = vector.load %arg3[%c64_5, %c32_6] : memref<128x128xf32, #tpu.memory_space<vmem>>, vector<16x1xf32>
    %c80 = arith.constant 80 : index
    %c0_7 = arith.constant 0 : index
    %5 = vector.load %arg3[%c80, %c0_7] : memref<128x128xf32, #tpu.memory_space<vmem>>, vector<16x32xf32>
    %c80_8 = arith.constant 80 : index
    %c32_9 = arith.constant 32 : index
    %6 = vector.load %arg3[%c80_8, %c32_9] : memref<128x128xf32, #tpu.memory_space<vmem>>, vector<16x1xf32>
    %c96 = arith.constant 96 : index
    %c0_10 = arith.constant 0 : index
    %7 = vector.load %arg3[%c96, %c0_10] : memref<128x128xf32, #tpu.memory_space<vmem>>, vector<8x16xf32>
    %c96_11 = arith.constant 96 : index
    %c32_12 = arith.constant 32 : index
    %8 = vector.load %arg3[%c96_11, %c32_12] : memref<128x128xf32, #tpu.memory_space<vmem>>, vector<8x1xf32>
    %c104 = arith.constant 104 : index
    %c0_13 = arith.constant 0 : index
    %9 = vector.load %arg3[%c104, %c0_13] : memref<128x128xf32, #tpu.memory_space<vmem>>, vector<8x16xf32>
    %c104_14 = arith.constant 104 : index
    %c32_15 = arith.constant 32 : index
    %10 = vector.load %arg3[%c104_14, %c32_15] : memref<128x128xf32, #tpu.memory_space<vmem>>, vector<8x1xf32>
    %cst = arith.constant dense<0.000000e+00> : vector<64x128xf32>
    %11 = tpu.matmul %1, %0, %cst {dimension_numbers = #tpu.dot_dimension_numbers<[1], [0], [0], [1], [0, 0, 1, 1], [], []>} : vector<64x4xf32>, vector<4x128xf32>, vector<64x128xf32> -> vector<64x128xf32>
    %12 = vector.broadcast %2 : vector<64x1xf32> to vector<64x128xf32>
    %13 = arith.addf %11, %12 : vector<64x128xf32>
    %14 = vector.extract_strided_slice %13 {offsets = [0, 0], sizes = [32, 128], strides = [1, 1]} : vector<64x128xf32> to vector<32x128xf32>
    %cst_16 = arith.constant 0.000000e+00 : f32
    %15 = vector.broadcast %cst_16 : f32 to vector<32x128xf32>
    %16 = arith.maximumf %14, %15 : vector<32x128xf32>
    %17 = vector.extract_strided_slice %13 {offsets = [32, 0], sizes = [32, 128], strides = [1, 1]} : vector<64x128xf32> to vector<32x128xf32>
    %18 = arith.subf %16, %17 : vector<32x128xf32>
    %cst_17 = arith.constant 5.000000e-01 : f32
    %19 = vector.broadcast %cst_17 : f32 to vector<32x128xf32>
    %20 = arith.mulf %19, %18 : vector<32x128xf32>
    %21 = arith.addf %17, %20 : vector<32x128xf32>
    %cst_18 = arith.constant dense<0.000000e+00> : vector<16x128xf32>
    %22 = tpu.matmul %3, %21, %cst_18 {dimension_numbers = #tpu.dot_dimension_numbers<[1], [0], [0], [1], [0, 0, 1, 1], [], []>} : vector<16x32xf32>, vector<32x128xf32>, vector<16x128xf32> -> vector<16x128xf32>
    %23 = vector.broadcast %4 : vector<16x1xf32> to vector<16x128xf32>
    %24 = arith.addf %22, %23 : vector<16x128xf32>
    %cst_19 = arith.constant 0.000000e+00 : f32
    %25 = vector.broadcast %cst_19 : f32 to vector<16x128xf32>
    %26 = arith.maximumf %24, %25 : vector<16x128xf32>
    %cst_20 = arith.constant dense<0.000000e+00> : vector<16x128xf32>
    %27 = tpu.matmul %5, %17, %cst_20 {dimension_numbers = #tpu.dot_dimension_numbers<[1], [0], [0], [1], [0, 0, 1, 1], [], []>} : vector<16x32xf32>, vector<32x128xf32>, vector<16x128xf32> -> vector<16x128xf32>
    %28 = vector.broadcast %6 : vector<16x1xf32> to vector<16x128xf32>
    %29 = arith.addf %27, %28 : vector<16x128xf32>
    %30 = arith.subf %26, %29 : vector<16x128xf32>
    %cst_21 = arith.constant 5.000000e-01 : f32
    %31 = vector.broadcast %cst_21 : f32 to vector<16x128xf32>
    %32 = arith.mulf %31, %30 : vector<16x128xf32>
    %33 = arith.addf %29, %32 : vector<16x128xf32>
    %cst_22 = arith.constant dense<0.000000e+00> : vector<8x128xf32>
    %34 = tpu.matmul %7, %33, %cst_22 {dimension_numbers = #tpu.dot_dimension_numbers<[1], [0], [0], [1], [0, 0, 1, 1], [], []>} : vector<8x16xf32>, vector<16x128xf32>, vector<8x128xf32> -> vector<8x128xf32>
    %35 = vector.broadcast %8 : vector<8x1xf32> to vector<8x128xf32>
    %36 = arith.addf %34, %35 : vector<8x128xf32>
    %cst_23 = arith.constant 0.000000e+00 : f32
    %37 = vector.broadcast %cst_23 : f32 to vector<8x128xf32>
    %38 = arith.maximumf %36, %37 : vector<8x128xf32>
    %cst_24 = arith.constant dense<0.000000e+00> : vector<8x128xf32>
    %39 = tpu.matmul %9, %29, %cst_24 {dimension_numbers = #tpu.dot_dimension_numbers<[1], [0], [0], [1], [0, 0, 1, 1], [], []>} : vector<8x16xf32>, vector<16x128xf32>, vector<8x128xf32> -> vector<8x128xf32>
    %40 = vector.broadcast %10 : vector<8x1xf32> to vector<8x128xf32>
    %41 = arith.addf %39, %40 : vector<8x128xf32>
    %42 = arith.subf %38, %41 : vector<8x128xf32>
    %cst_25 = arith.constant 5.000000e-01 : f32
    %43 = vector.broadcast %cst_25 : f32 to vector<8x128xf32>
    %44 = arith.mulf %43, %42 : vector<8x128xf32>
    %45 = arith.addf %41, %44 : vector<8x128xf32>
    %c0_i32 = arith.constant 0 : i32
    %46 = arith.cmpi eq, %arg0, %c0_i32 : i32
    %c0_i32_26 = arith.constant 0 : i32
    %47 = arith.cmpi eq, %arg1, %c0_i32_26 : i32
    %48 = arith.andi %46, %47 : i1
    %49 = arith.extui %48 : i1 to i32
    %c0_i32_27 = arith.constant 0 : i32
    %50 = arith.cmpi ne, %49, %c0_i32_27 : i32
    scf.if %50 {
      %cst_31 = arith.constant 0.000000e+00 : f32
      %57 = vector.broadcast %cst_31 : f32 to vector<8x1xf32>
      %c0_32 = arith.constant 0 : index
      %c0_33 = arith.constant 0 : index
      %58 = vector.load %arg5[%c0_32, %c0_33] : memref<8x1xf32, #tpu.memory_space<vmem>>, vector<8x1xf32>
      tpu.vector_store %arg5[%c0_32, %c0_33], %57 {strides = array<i32>} : memref<8x1xf32, #tpu.memory_space<vmem>>, vector<8x1xf32>,
      %cst_34 = arith.constant 0.000000e+00 : f32
      %59 = vector.broadcast %cst_34 : f32 to vector<8x1xf32>
      %c0_35 = arith.constant 0 : index
      %c0_36 = arith.constant 0 : index
      %60 = vector.load %arg6[%c0_35, %c0_36] : memref<8x1xf32, #tpu.memory_space<vmem>>, vector<8x1xf32>
      tpu.vector_store %arg6[%c0_35, %c0_36], %59 {strides = array<i32>} : memref<8x1xf32, #tpu.memory_space<vmem>>, vector<8x1xf32>,
    } else {
    }
    %c0_i32_28 = arith.constant 0 : i32
    %51 = arith.cmpi eq, %arg0, %c0_i32_28 : i32
    %52 = arith.extui %51 : i1 to i32
    %c0_i32_29 = arith.constant 0 : i32
    %53 = arith.cmpi ne, %52, %c0_i32_29 : i32
    scf.if %53 {
      %57 = tpu.iota {dimensions = array<i32: 1>} : vector<8x128xi32>
      %c128_i32 = arith.constant 128 : i32
      %58 = arith.muli %arg1, %c128_i32 : i32
      %59 = vector.broadcast %58 : i32 to vector<8x128xi32>
      %60 = arith.addi %57, %59 : vector<8x128xi32>
      %c200_i32 = arith.constant 200 : i32
      %61 = vector.broadcast %c200_i32 : i32 to vector<8x128xi32>
      %62 = arith.cmpi slt, %60, %61 : vector<8x128xi32>
      %cst_31 = arith.constant 0.000000e+00 : f32
      %63 = vector.broadcast %cst_31 : f32 to vector<8x128xf32>
      %64 = arith.select %62, %45, %63 : vector<8x128xi1>, vector<8x128xf32>
      %c0_32 = arith.constant 0 : index
      %c0_33 = arith.constant 0 : index
      %65 = vector.load %arg5[%c0_32, %c0_33] : memref<8x1xf32, #tpu.memory_space<vmem>>, vector<8x1xf32>
      %cst_34 = arith.constant dense<0.000000e+00> : vector<8xf32>
      %66 = vector.multi_reduction <add>, %64, %cst_34 [1] : vector<8x128xf32> to vector<8xf32>
      %67 = vector.shape_cast %66 : vector<8xf32> to vector<8x1xf32>
      %68 = arith.addf %65, %67 : vector<8x1xf32>
      %c0_35 = arith.constant 0 : index
      %c0_36 = arith.constant 0 : index
      %69 = vector.load %arg5[%c0_35, %c0_36] : memref<8x1xf32, #tpu.memory_space<vmem>>, vector<8x1xf32>
      tpu.vector_store %arg5[%c0_35, %c0_36], %68 {strides = array<i32>} : memref<8x1xf32, #tpu.memory_space<vmem>>, vector<8x1xf32>,
      %c0_37 = arith.constant 0 : index
      %c0_38 = arith.constant 0 : index
      %70 = vector.load %arg6[%c0_37, %c0_38] : memref<8x1xf32, #tpu.memory_space<vmem>>, vector<8x1xf32>
      %71 = arith.mulf %64, %45 : vector<8x128xf32>
      %cst_39 = arith.constant dense<0.000000e+00> : vector<8xf32>
      %72 = vector.multi_reduction <add>, %71, %cst_39 [1] : vector<8x128xf32> to vector<8xf32>
      %73 = vector.shape_cast %72 : vector<8xf32> to vector<8x1xf32>
      %74 = arith.addf %70, %73 : vector<8x1xf32>
      %c0_40 = arith.constant 0 : index
      %c0_41 = arith.constant 0 : index
      %75 = vector.load %arg6[%c0_40, %c0_41] : memref<8x1xf32, #tpu.memory_space<vmem>>, vector<8x1xf32>
      tpu.vector_store %arg6[%c0_40, %c0_41], %74 {strides = array<i32>} : memref<8x1xf32, #tpu.memory_space<vmem>>, vector<8x1xf32>,
    } else {
    }
    %c1_i32 = arith.constant 1 : i32
    %54 = arith.cmpi eq, %arg0, %c1_i32 : i32
    %55 = arith.extui %54 : i1 to i32
    %c0_i32_30 = arith.constant 0 : i32
    %56 = arith.cmpi ne, %55, %c0_i32_30 : i32
    scf.if %56 {
      %c96_31 = arith.constant 96 : index
      %c33 = arith.constant 33 : index
      %57 = vector.load %arg3[%c96_31, %c33] : memref<128x128xf32, #tpu.memory_space<vmem>>, vector<8x1xf32>
      %c96_32 = arith.constant 96 : index
      %c34 = arith.constant 34 : index
      %58 = vector.load %arg3[%c96_32, %c34] : memref<128x128xf32, #tpu.memory_space<vmem>>, vector<8x1xf32>
      %c112 = arith.constant 112 : index
      %c0_33 = arith.constant 0 : index
      %59 = vector.load %arg3[%c112, %c0_33] : memref<128x128xf32, #tpu.memory_space<vmem>>, vector<3x8xf32>
      %c112_34 = arith.constant 112 : index
      %c32_35 = arith.constant 32 : index
      %60 = vector.load %arg3[%c112_34, %c32_35] : memref<128x128xf32, #tpu.memory_space<vmem>>, vector<3x1xf32>
      %c120 = arith.constant 120 : index
      %c0_36 = arith.constant 0 : index
      %61 = vector.load %arg3[%c120, %c0_36] : memref<128x128xf32, #tpu.memory_space<vmem>>, vector<8x8xf32>
      %c0_37 = arith.constant 0 : index
      %c0_38 = arith.constant 0 : index
      %62 = vector.load %arg5[%c0_37, %c0_38] : memref<8x1xf32, #tpu.memory_space<vmem>>, vector<8x1xf32>
      %cst_39 = arith.constant 5.000000e-03 : f32
      %63 = vector.broadcast %cst_39 : f32 to vector<8x1xf32>
      %64 = arith.mulf %62, %63 : vector<8x1xf32>
      %c0_40 = arith.constant 0 : index
      %c0_41 = arith.constant 0 : index
      %65 = vector.load %arg6[%c0_40, %c0_41] : memref<8x1xf32, #tpu.memory_space<vmem>>, vector<8x1xf32>
      %cst_42 = arith.constant 5.000000e-03 : f32
      %66 = vector.broadcast %cst_42 : f32 to vector<8x1xf32>
      %67 = arith.mulf %65, %66 : vector<8x1xf32>
      %68 = arith.mulf %64, %64 : vector<8x1xf32>
      %69 = arith.subf %67, %68 : vector<8x1xf32>
      %cst_43 = arith.constant 9.99999974E-6 : f32
      %70 = vector.broadcast %cst_43 : f32 to vector<8x1xf32>
      %71 = arith.addf %69, %70 : vector<8x1xf32>
      %72 = math.rsqrt %71 : vector<8x1xf32>
      %73 = arith.mulf %57, %72 : vector<8x1xf32>
      %74 = vector.broadcast %73 : vector<8x1xf32> to vector<8x8xf32>
      %75 = arith.mulf %61, %74 : vector<8x8xf32>
      %cst_44 = arith.constant dense<0.000000e+00> : vector<3x8xf32>
      %76 = tpu.matmul %59, %75, %cst_44 {dimension_numbers = #tpu.dot_dimension_numbers<[1], [0], [0], [1], [0, 0, 1, 1], [], []>} : vector<3x8xf32>, vector<8x8xf32>, vector<3x8xf32> -> vector<3x8xf32>
      %77 = arith.mulf %64, %73 : vector<8x1xf32>
      %78 = arith.subf %58, %77 : vector<8x1xf32>
      %cst_45 = arith.constant dense<0.000000e+00> : vector<3x1xf32>
      %79 = tpu.matmul %59, %78, %cst_45 {dimension_numbers = #tpu.dot_dimension_numbers<[1], [0], [0], [1], [0, 0, 1, 1], [], []>} : vector<3x8xf32>, vector<8x1xf32>, vector<3x1xf32> -> vector<3x1xf32>
      %80 = arith.addf %79, %60 : vector<3x1xf32>
      %cst_46 = arith.constant dense<0.000000e+00> : vector<3x128xf32>
      %81 = tpu.matmul %76, %45, %cst_46 {dimension_numbers = #tpu.dot_dimension_numbers<[1], [0], [0], [1], [0, 0, 1, 1], [], []>} : vector<3x8xf32>, vector<8x128xf32>, vector<3x128xf32> -> vector<3x128xf32>
      %82 = vector.broadcast %80 : vector<3x1xf32> to vector<3x128xf32>
      %83 = arith.addf %81, %82 : vector<3x128xf32>
      %c0_47 = arith.constant 0 : index
      %c0_48 = arith.constant 0 : index
      %84 = vector.load %arg4[%c0_47, %c0_48] : memref<3x128xf32, #tpu.memory_space<vmem>>, vector<3x128xf32>
      tpu.vector_store %arg4[%c0_47, %c0_48], %83 {strides = array<i32>} : memref<3x128xf32, #tpu.memory_space<vmem>>, vector<3x128xf32>,
    } else {
    }
    return
  }
  func.func @transform_0(%arg0: i32, %arg1: i32) -> (i32, i32) {
    %c0_i32 = arith.constant 0 : i32
    %c0_i32_0 = arith.constant 0 : i32
    return %c0_i32, %arg1 : i32, i32
  }
  func.func @transform_1(%arg0: i32, %arg1: i32) -> (i32, i32) {
    %c0_i32 = arith.constant 0 : i32
    %c0_i32_0 = arith.constant 0 : i32
    %c0_i32_1 = arith.constant 0 : i32
    return %c0_i32, %c0_i32_0 : i32, i32
  }
  func.func @transform_2(%arg0: i32, %arg1: i32) -> (i32, i32) {
    %c0_i32 = arith.constant 0 : i32
    %c0_i32_0 = arith.constant 0 : i32
    return %c0_i32, %arg1 : i32, i32
  }
}

</mosaic_0001>

<llo_original>
// kernel: treenn_forward.1
$region0: #{treenn_forward.1}
  #allocation0 [shape = 'u32[]', space=smem, size = 0x4, offset = 0x4, fixed_abs, tag = 'smem constant byte address 0x4 - core index']
  #allocation1 [shape = 'u32[144,128]{1,0:T(1,128)}', space=vmem, size = 0x12000, scoped, tag = 'internal scratch']
  #allocation2 [shape = 'f32[8,1]{1,0:T(8,128)}', space=vmem, size = 0x1000, scoped, tag = 'scratch operand']
  #allocation3 [shape = 'f32[8,1]{1,0:T(8,128)}', space=vmem, size = 0x1000, scoped, tag = 'scratch operand']
  %s0 = inlined_call_operand.vmem [shape: f32[4,256], index: 0, kind: input, shape index: {}]
  %s1 = inlined_call_operand.hbm [shape: f32[128,128], index: 1, kind: input, shape index: {}]
  %s2 = inlined_call_operand.vmem [shape: f32[3,256], index: 2, kind: output, shape index: {}]
  %s3 = sld [smem:[#allocation0]]
  $region57: #{treenn_forward.1} parent=0
    _
  %s5 = ssub.s32 1, %s3
  %s6 = scalar_select 0, %s5, %s3
  $region1: #{treenn_forward.1} parent=0
    #allocation4 [shape = 'u8[65536]{0}', space=vmem, size = 0x10000, scoped, tag = 'input window, operand 1, single buffered']
    #allocation5 [shape = 's32[2]{0}', space=sflag, size = 0x8, scoped, tag = 'scoped memory for treenn_forward.1']
    %7 = vsyncpa [#allocation5], 0
    loop: start=0, step=1, limit=6
    $region2: #{treenn_forward.1} parent=1 // loop_pre_header
      _
    $region3: #{treenn_forward.1} parent=1 // loop_header
      %s9 = sphi 0, %s13
      %p10 = scmp.ge.s32.totalorder %s9, 6
      %s16 = sphi 0, %s28
      %s17 = sphi 0, %s24
      %s18 = sphi 0, %s16
      %s19 = sphi 0, %s17
      %s20 = sphi 0, %s18
      %s21 = sphi 0, %s19
      %s31 = sphi 0, %s33
      %s34 = sphi 0, %s31
      %s35 = sphi 0, %s34
      %s51 = sphi 0, %s35
      %s55 = sphi 0, %s55
      %s57 = sphi 0, %s55
      %s58 = sphi 0, %s57
      %s72 = sphi 0, %s58
      %s78 = sphi 0, %s80
      %s81 = sphi 0, %s78
      %s82 = sphi 0, %s81
      %s98 = sphi 0, %s82
    $region4: #{treenn_forward.1} parent=1 // loop_header_branch
      %12 = sbr.rel (%p10) target = $region8
    $region5: #{treenn_forward.1} parent=1 // loop_body
      %s14 = ssub.s32 %s9, 1
      %s15 = ssub.s32 %s9, 2
      %s22 = sadd.s32 1, %s17
      %p23 = scmp.ge.s32.totalorder %s22, 2
      %s24 = scalar_select %p23, 0, %s22
      %s25 = sadd.s32 1, %s16
      %s26 = scalar_select %p23, %s25, %s16
      %p27 = scmp.ge.s32.totalorder %s26, 2
      %s28 = scalar_select %p27, 0, %s26
      %s29 = ssub.s32 %s17, %s24
      %p30 = scmp.eq.s32.totalorder %s29, 0
      %s32 = sadd.s32 %s31, 1
      %s33 = scalar_select %p30, %s31, %s32
      %p36 = pneg %p30
      %p37 = scmp.eq.s32.totalorder %s9, 3
      %p38 = por %p36, %p37
      %p39 = scmp.ne.s32.totalorder %s31, %s34
      %p40 = scmp.eq.s32.totalorder %s9, 0
      %p41 = por %p39, %p40
      %p42 = scmp.ne.s32.totalorder %s31, %s34
      %p43 = scmp.eq.s32.totalorder %s14, 3
      %p44 = por %p42, %p43
      %p45 = scmp.ne.s32.totalorder %s34, %s35
      %p46 = scmp.eq.s32.totalorder %s14, 0
      %p47 = por %p45, %p46
      %p48 = scmp.ne.s32.totalorder %s34, %s35
      %p49 = scmp.eq.s32.totalorder %s15, 3
      %p50 = por %p48, %p49
      %p52 = scmp.ne.s32.totalorder %s35, %s51
      %p53 = scmp.eq.s32.totalorder %s15, 0
      %p54 = por %p52, %p53
      %s56 = sadd.s32 %s55, 1
      %p59 = scmp.eq.s32.totalorder %s9, 3
      %p60 = scmp.ne.s32.totalorder %s55, %s57
      %p61 = scmp.eq.s32.totalorder %s9, 0
      %p62 = por %p60, %p61
      %p63 = scmp.ne.s32.totalorder %s55, %s57
      %p64 = scmp.eq.s32.totalorder %s14, 3
      %p65 = por %p63, %p64
      %p66 = scmp.ne.s32.totalorder %s57, %s58
      %p67 = scmp.eq.s32.totalorder %s14, 0
      %p68 = por %p66, %p67
      %p69 = scmp.ne.s32.totalorder %s57, %s58
      %p70 = scmp.eq.s32.totalorder %s15, 3
      %p71 = por %p69, %p70
      %p73 = scmp.ne.s32.totalorder %s58, %s72
      %p74 = scmp.eq.s32.totalorder %s15, 0
      %p75 = por %p73, %p74
      %s76 = ssub.s32 %s17, %s24
      %p77 = scmp.eq.s32.totalorder %s76, 0
      %s79 = sadd.s32 %s78, 1
      %s80 = scalar_select %p77, %s78, %s79
      %p83 = pneg %p77
      %p84 = scmp.eq.s32.totalorder %s9, 3
      %p85 = por %p83, %p84
      %p86 = scmp.ne.s32.totalorder %s78, %s81
      %p87 = scmp.eq.s32.totalorder %s9, 0
      %p88 = por %p86, %p87
      %p89 = scmp.ne.s32.totalorder %s78, %s81
      %p90 = scmp.eq.s32.totalorder %s14, 3
      %p91 = por %p89, %p90
      %p92 = scmp.ne.s32.totalorder %s81, %s82
      %p93 = scmp.eq.s32.totalorder %s14, 0
      %p94 = por %p92, %p93
      %p95 = scmp.ne.s32.totalorder %s81, %s82
      %p96 = scmp.eq.s32.totalorder %s15, 3
      %p97 = por %p95, %p96
      %p99 = scmp.ne.s32.totalorder %s82, %s98
      %p100 = scmp.eq.s32.totalorder %s15, 0
      %p101 = por %p99, %p100
      %p102 = scmp.le.s32.totalorder 1, %s9
      %p103 = scmp.lt.s32.totalorder %s9, 5
      %p104 = pnand %p102, %p103
      %p105 = pneg %p104
      // Predicated region
      $region9: #{treenn_forward.1} parent=5 // pred_check
        _
      $region10: #{treenn_forward.1} parent=5 // pred_check_branch
        %107 = sbr.rel (%p104) target = $region12
      $region11: #{treenn_forward.1} parent=5 // pred_region
        %s108 = ssub.s32 %s9, 1
        // Predicated region
        $region13: #{treenn_forward.1} parent=11 // pred_check
          %p109 = pneg %p68
        $region14: #{treenn_forward.1} parent=11 // pred_check_branch
          %111 = sbr.rel (%p109) target = $region16
        $region15: #{treenn_forward.1} parent=11 // pred_region
          %s113 = ssub.s32 2048, 2048
          %114 = vsyncadd [#allocation5], %s113
          %s115 = sshll.u32 [#allocation4], 4
          %s116 = int_to_ptr.vmem [resolvable:$true] %s115
          %121 = dma.hbm_to_vmem [thread:$0]  %s1, 2048, %s116, [#allocation5], 128, 128, 8
        $region16: #{treenn_forward.1} parent=11 // pred_fallthru
          _
      $region12: #{treenn_forward.1} parent=5 // pred_fallthru
        _
      %p122 = scmp.lt.s32.totalorder %s9, 4
      // Predicated region
      $region17: #{treenn_forward.1} parent=5 // pred_check
        %p123 = pneg %p122
      $region18: #{treenn_forward.1} parent=5 // pred_check_branch
        %125 = sbr.rel (%p123) target = $region20
      $region19: #{treenn_forward.1} parent=5 // pred_region
        // Predicated region
        $region21: #{treenn_forward.1} parent=19 // pred_check
          %p126 = pneg %p41
        $region22: #{treenn_forward.1} parent=19 // pred_check_branch
          %128 = sbr.rel (%p126) target = $region24
        $region23: #{treenn_forward.1} parent=19 // pred_region
          %p129 = scmp.lt.s32.totalorder %s17, 1
          %s130 = scalar_select %p129, %s17, 1
          %s131 = smul.addr %s130, 4
          %s132 = scalar_lea.vmem %s0, %s131
        $region24: #{treenn_forward.1} parent=19 // pred_fallthru
          _
      $region20: #{treenn_forward.1} parent=5 // pred_fallthru
        _
      %p133 = scmp.le.s32.totalorder 1, %s9
      %p134 = scmp.lt.s32.totalorder %s9, 5
      %p135 = pnand %p133, %p134
      %p136 = pneg %p135
      // Predicated region
      $region25: #{treenn_forward.1} parent=5 // pred_check
        _
      $region26: #{treenn_forward.1} parent=5 // pred_check_branch
        %138 = sbr.rel (%p135) target = $region28
      $region27: #{treenn_forward.1} parent=5 // pred_region
        %s139 = ssub.s32 %s9, 1
        // Predicated region
        $region29: #{treenn_forward.1} parent=27 // pred_check
          %p140 = pneg %p68
        $region30: #{treenn_forward.1} parent=27 // pred_check_branch
          %142 = sbr.rel (%p140) target = $region32
        $region31: #{treenn_forward.1} parent=27 // pred_region
          %143 = dma.done [#allocation5], 2048
        $region32: #{treenn_forward.1} parent=27 // pred_fallthru
          _
        %p144 = scmp.lt.s32.totalorder %s19, 1
        %s145 = scalar_select %p144, %s19, 1
        %s146 = smul.addr %s145, 4
        %s147 = scalar_lea.vmem %s0, %s146
        %p148 = pneg %p47
        %p149 = pneg %p44
        %p150 = pneg %p68
        %p151 = pneg %p65
        %p152 = pneg %p94
        %p153 = pneg %p91
        %p154 = scmp.lt.s32.totalorder %s19, 1
        %s155 = scalar_select %p154, %s19, 1
        %s156 = smul.addr %s155, 4
        %s157 = scalar_lea.vmem %s2, %s156
        %p158 = scmp.lt.s32.totalorder %s19, 1
        %s159 = scalar_select %p158, %s19, 1
        %s160 = smul.addr %s159, 4
        %s161 = scalar_lea.vmem %s0, %s160
        %p162 = scmp.lt.s32.totalorder %s19, 1
        %s163 = scalar_select %p162, %s19, 1
        %s164 = smul.addr %s163, 4
        %s165 = scalar_lea.vmem %s2, %s164
        %v166 = vld [vmem:[%s161] sm:$0xf]
        %v167 = vld [vmem:[#allocation4] sm:$0xff]
        %v168 = vld [vmem:[#allocation4 + $0x8] sm:$0xff]
        %v169 = vld [vmem:[#allocation4 + $0x10] sm:$0xff]
        %v170 = vld [vmem:[#allocation4 + $0x18] sm:$0xff]
        %v171 = vld [vmem:[#allocation4 + $0x20] sm:$0xff]
        %v172 = vld [vmem:[#allocation4 + $0x28] sm:$0xff]
        %v173 = vld [vmem:[#allocation4 + $0x30] sm:$0xff]
        %v174 = vld [vmem:[#allocation4 + $0x38] sm:$0xff]
        %v175 = vld [vmem:[#allocation4 + $0x40] sm:$0xff]
        %v176 = vld [vmem:[#allocation4 + $0x48] sm:$0xff]
        %v177 = vld [vmem:[#allocation4 + $0x50] sm:$0xff]
        %v178 = vld [vmem:[#allocation4 + $0x58] sm:$0xff]
        %v179 = vld [vmem:[#allocation4 + $0x60] sm:$0xff]
        %v180 = vld [vmem:[#allocation4 + $0x68] sm:$0xff]
        %182 = vset.pattern.permute.xlu0 32
        %183 = vperm.xlu0 %182, %v167
        %v184 = vpop.permute.xlu0 %183
        %187 = vset.pattern.permute.xlu0 32
        %188 = vperm.xlu0 %187, %v168
        %v189 = vpop.permute.xlu0 %188
        %192 = vset.pattern.permute.xlu0 32
        %193 = vperm.xlu0 %192, %v169
        %v194 = vpop.permute.xlu0 %193
        %197 = vset.pattern.permute.xlu0 32
        %198 = vperm.xlu0 %197, %v170
        %v199 = vpop.permute.xlu0 %198
        %202 = vset.pattern.permute.xlu0 32
        %203 = vperm.xlu0 %202, %v171
        %v204 = vpop.permute.xlu0 %203
        %207 = vset.pattern.permute.xlu0 32
        %208 = vperm.xlu0 %207, %v172
        %v209 = vpop.permute.xlu0 %208
        %212 = vset.pattern.permute.xlu0 32
        %213 = vperm.xlu0 %212, %v173
        %v214 = vpop.permute.xlu0 %213
        %217 = vset.pattern.permute.xlu0 32
        %218 = vperm.xlu0 %217, %v174
        %v219 = vpop.permute.xlu0 %218
        %vm221 = vcmask 31744
        %v222 = vsel %vm221, %v167, 0
        %v224 = vsel %vm221, %v168, 0
        %v226 = vsel %vm221, %v169, 0
        %v228 = vsel %vm221, %v170, 0
        %v230 = vsel %vm221, %v171, 0
        %v232 = vsel %vm221, %v172, 0
        %v234 = vsel %vm221, %v173, 0
        %v236 = vsel %vm221, %v174, 0
        %vm238 = vcmask 1043456
        %v240 = vsel %vm238, %v166, 0
        %242 = vmatprep.subr.mxu0 0.0
        %243 = vmatpush1.msra.mxu0 %v240
        %244 = vmatprep.subr.mxu0 0.0
        %245 = vmatpush1.msra.mxu0 0.0
        %246 = vmatprep.subr.mxu0 0.0
        %247 = vmatpush1.msra.mxu0 0.0
        %248 = vmatprep.subr.mxu0 0.0
        %249 = vmatpush1.msra.mxu0 0.0
        %250 = vmatprep.subr.mxu0 0.0
        %251 = vmatpush1.msra.mxu0 0.0
        %252 = vmatprep.subr.mxu0 0.0
        %253 = vmatpush1.msra.mxu0 0.0
        %254 = vmatprep.subr.mxu0 0.0
        %255 = vmatpush1.msra.mxu0 0.0
        %256 = vmatprep.subr.mxu0 0.0
        %257 = vmatpush1.msra.mxu0 0.0
        %258 = vmatprep.subr.mxu0 0.0
        %259 = vmatpush1.msra.mxu0 0.0
        %260 = vmatprep.subr.mxu0 0.0
        %261 = vmatpush1.msra.mxu0 0.0
        %262 = vmatprep.subr.mxu0 0.0
        %263 = vmatpush1.msra.mxu0 0.0
        %264 = vmatprep.subr.mxu0 0.0
        %265 = vmatpush1.msra.mxu0 0.0
        %266 = vmatprep.subr.mxu0 0.0
        %267 = vmatpush1.msra.mxu0 0.0
        %268 = vmatprep.subr.mxu0 0.0
        %269 = vmatpush1.msra.mxu0 0.0
        %270 = vmatprep.subr.mxu0 0.0
        %271 = vmatpush1.msra.mxu0 0.0
        %272 = vmatprep.subr.mxu0 0.0
        %273 = vmatpush1.msra.mxu0 0.0
        %274 = vmatprep.subr.mxu0 0.0
        %275 = vmatpush1.msra.mxu0 0.0
        %276 = vmatprep.subr.mxu0 0.0
        %277 = vmatpush1.msra.mxu0 0.0
        %278 = vmatprep.subr.mxu0 0.0
        %279 = vmatpush1.msra.mxu0 0.0
        %280 = vmatprep.subr.mxu0 0.0
        %281 = vmatpush1.msra.mxu0 0.0
        %282 = vmatprep.subr.mxu0 0.0
        %283 = vmatpush1.msra.mxu0 0.0
        %284 = vmatprep.subr.mxu0 0.0
        %285 = vmatpush1.msra.mxu0 0.0
        %286 = vmatprep.subr.mxu0 0.0
        %287 = vmatpush1.msra.mxu0 0.0
        %288 = vmatprep.subr.mxu0 0.0
        %289 = vmatpush1.msra.mxu0 0.0
        %290 = vmatprep.subr.mxu0 0.0
        %291 = vmatpush1.msra.mxu0 0.0
        %292 = vmatprep.subr.mxu0 0.0
        %293 = vmatpush1.msra.mxu0 0.0
        %294 = vmatprep.subr.mxu0 0.0
        %295 = vmatpush1.msra.mxu0 0.0
        %296 = vmatprep.subr.mxu0 0.0
        %297 = vmatpush1.msra.mxu0 0.0
        %298 = vmatprep.subr.mxu0 0.0
        %299 = vmatpush1.msra.mxu0 0.0
        %300 = vmatprep.subr.mxu0 0.0
        %301 = vmatpush1.msra.mxu0 0.0
        %302 = vmatprep.subr.mxu0 0.0
        %303 = vmatpush1.msra.mxu0 0.0
        %304 = vmatprep.subr.mxu0 0.0
        %305 = vmatpush1.msra.mxu0 0.0
        %306 = vmatprep.mubr.f32.mxu0 0.0
        %307 = vmatmul.mubr.f32.gmra.mrb[0].mxu0 %v222
        %v308 = vpop.f32.mrb[0].mxu0
        %v309 = vadd.f32 %v184, %v308
        %v310 = vpop.f32.mrb[0].mxu0
        %311 = vmatprep.mubr.f32.mxu0 0.0
        %312 = vmatmul.mubr.f32.gmra.mrb[0].mxu0 %v224
        %v313 = vpop.f32.mrb[0].mxu0
        %v314 = vadd.f32 %v189, %v313
        %v315 = vpop.f32.mrb[0].mxu0
        %316 = vmatprep.mubr.f32.mxu0 0.0
        %317 = vmatmul.mubr.f32.gmra.mrb[0].mxu0 %v226
        %v318 = vpop.f32.mrb[0].mxu0
        %v319 = vadd.f32 %v194, %v318
        %v320 = vpop.f32.mrb[0].mxu0
        %321 = vmatprep.mubr.f32.mxu0 0.0
        %322 = vmatmul.mubr.f32.gmra.mrb[0].mxu0 %v228
        %v323 = vpop.f32.mrb[0].mxu0
        %v324 = vadd.f32 %v199, %v323
        %v325 = vpop.f32.mrb[0].mxu0
        %326 = vmatprep.mubr.f32.mxu0 0.0
        %327 = vmatmul.mubr.f32.gmra.mrb[0].mxu0 %v230
        %v328 = vpop.f32.mrb[0].mxu0
        %v329 = vadd.f32 %v204, %v328
        %v330 = vpop.f32.mrb[0].mxu0
        %331 = vmatprep.mubr.f32.mxu0 0.0
        %332 = vmatmul.mubr.f32.gmra.mrb[0].mxu0 %v232
        %v333 = vpop.f32.mrb[0].mxu0
        %v334 = vadd.f32 %v209, %v333
        %v335 = vpop.f32.mrb[0].mxu0
        %336 = vmatprep.mubr.f32.mxu0 0.0
        %337 = vmatmul.mubr.f32.gmra.mrb[0].mxu0 %v234
        %v338 = vpop.f32.mrb[0].mxu0
        %v339 = vadd.f32 %v214, %v338
        %v340 = vpop.f32.mrb[0].mxu0
        %341 = vmatprep.mubr.f32.mxu0 0.0
        %342 = vmatmul.mubr.f32.gmra.mrb[0].mxu0 %v236
        %v343 = vpop.f32.mrb[0].mxu0
        %v344 = vadd.f32 %v219, %v343
        %v345 = vpop.f32.mrb[0].mxu0
        %346 = vdwg.mxu0
        %v347 = vmax.f32 %v309, 0.0
        %v348 = vmax.f32 %v314, 0.0
        %v349 = vmax.f32 %v319, 0.0
        %v350 = vmax.f32 %v324, 0.0
        %v351 = vsub.f32 %v347, %v329
        %v352 = vsub.f32 %v348, %v334
        %v353 = vsub.f32 %v349, %v339
        %v354 = vsub.f32 %v350, %v344
        %v355 = vmul.f32 %v351, 0.5
        %v356 = vmul.f32 %v352, 0.5
        %v357 = vmul.f32 %v353, 0.5
        %v358 = vmul.f32 %v354, 0.5
        %v359 = vadd.f32 %v329, %v355
        %v360 = vadd.f32 %v334, %v356
        %v361 = vadd.f32 %v339, %v357
        %v362 = vadd.f32 %v344, %v358
        %364 = vset.pattern.permute.xlu0 32
        %365 = vperm.xlu0 %364, %v175
        %v366 = vpop.permute.xlu0 %365
        %369 = vset.pattern.permute.xlu0 32
        %370 = vperm.xlu0 %369, %v176
        %v371 = vpop.permute.xlu0 %370
        %vm373 = vcmask 261120
        %v374 = vsel %vm373, %v175, 0
        %v376 = vsel %vm373, %v176, 0
        %378 = vmatprep.subr.mxu0 0.0
        %379 = vmatpush1.msra.mxu0 %v359
        %380 = vmatprep.subr.mxu0 0.0
        %381 = vmatpush1.msra.mxu0 %v360
        %382 = vmatprep.subr.mxu0 0.0
        %383 = vmatpush1.msra.mxu0 %v361
        %384 = vmatprep.subr.mxu0 0.0
        %385 = vmatpush1.msra.mxu0 %v362
        %386 = vmatprep.subr.mxu0 0.0
        %387 = vmatpush1.msra.mxu0 0.0
        %388 = vmatprep.subr.mxu0 0.0
        %389 = vmatpush1.msra.mxu0 0.0
        %390 = vmatprep.subr.mxu0 0.0
        %391 = vmatpush1.msra.mxu0 0.0
        %392 = vmatprep.subr.mxu0 0.0
        %393 = vmatpush1.msra.mxu0 0.0
        %394 = vmatprep.subr.mxu0 0.0
        %395 = vmatpush1.msra.mxu0 0.0
        %396 = vmatprep.subr.mxu0 0.0
        %397 = vmatpush1.msra.mxu0 0.0
        %398 = vmatprep.subr.mxu0 0.0
        %399 = vmatpush1.msra.mxu0 0.0
        %400 = vmatprep.subr.mxu0 0.0
        %401 = vmatpush1.msra.mxu0 0.0
        %402 = vmatprep.subr.mxu0 0.0
        %403 = vmatpush1.msra.mxu0 0.0
        %404 = vmatprep.subr.mxu0 0.0
        %405 = vmatpush1.msra.mxu0 0.0
        %406 = vmatprep.subr.mxu0 0.0
        %407 = vmatpush1.msra.mxu0 0.0
        %408 = vmatprep.subr.mxu0 0.0
        %409 = vmatpush1.msra.mxu0 0.0
        %410 = vmatprep.subr.mxu0 0.0
        %411 = vmatpush1.msra.mxu0 0.0
        %412 = vmatprep.subr.mxu0 0.0
        %413 = vmatpush1.msra.mxu0 0.0
        %414 = vmatprep.subr.mxu0 0.0
        %415 = vmatpush1.msra.mxu0 0.0
        %416 = vmatprep.subr.mxu0 0.0
        %417 = vmatpush1.msra.mxu0 0.0
        %418 = vmatprep.subr.mxu0 0.0
        %419 = vmatpush1.msra.mxu0 0.0
        %420 = vmatprep.subr.mxu0 0.0
        %421 = vmatpush1.msra.mxu0 0.0
        %422 = vmatprep.subr.mxu0 0.0
        %423 = vmatpush1.msra.mxu0 0.0
        %424 = vmatprep.subr.mxu0 0.0
        %425 = vmatpush1.msra.mxu0 0.0
        %426 = vmatprep.subr.mxu0 0.0
        %427 = vmatpush1.msra.mxu0 0.0
        %428 = vmatprep.subr.mxu0 0.0
        %429 = vmatpush1.msra.mxu0 0.0
        %430 = vmatprep.subr.mxu0 0.0
        %431 = vmatpush1.msra.mxu0 0.0
        %432 = vmatprep.subr.mxu0 0.0
        %433 = vmatpush1.msra.mxu0 0.0
        %434 = vmatprep.subr.mxu0 0.0
        %435 = vmatpush1.msra.mxu0 0.0
        %436 = vmatprep.subr.mxu0 0.0
        %437 = vmatpush1.msra.mxu0 0.0
        %438 = vmatprep.subr.mxu0 0.0
        %439 = vmatpush1.msra.mxu0 0.0
        %440 = vmatprep.subr.mxu0 0.0
        %441 = vmatpush1.msra.mxu0 0.0
        %442 = vmatprep.mubr.f32.mxu0 0.0
        %443 = vmatmul.mubr.f32.gmra.mrb[0].mxu0 %v374
        %v444 = vpop.f32.mrb[0].mxu0
        %v445 = vadd.f32 %v366, %v444
        %v446 = vpop.f32.mrb[0].mxu0
        %447 = vmatprep.mubr.f32.mxu0 0.0
        %448 = vmatmul.mubr.f32.gmra.mrb[0].mxu0 %v376
        %v449 = vpop.f32.mrb[0].mxu0
        %v450 = vadd.f32 %v371, %v449
        %v451 = vpop.f32.mrb[0].mxu0
        %452 = vdwg.mxu0
        %v453 = vmax.f32 %v445, 0.0
        %v454 = vmax.f32 %v450, 0.0
        %456 = vset.pattern.permute.xlu0 32
        %457 = vperm.xlu0 %456, %v177
        %v458 = vpop.permute.xlu0 %457
        %461 = vset.pattern.permute.xlu0 32
        %462 = vperm.xlu0 %461, %v178
        %v463 = vpop.permute.xlu0 %462
        %v465 = vsel %vm373, %v177, 0
        %v467 = vsel %vm373, %v178, 0
        %469 = vmatprep.subr.mxu0 0.0
        %470 = vmatpush1.msra.mxu0 %v329
        %471 = vmatprep.subr.mxu0 0.0
        %472 = vmatpush1.msra.mxu0 %v334
        %473 = vmatprep.subr.mxu0 0.0
        %474 = vmatpush1.msra.mxu0 %v339
        %475 = vmatprep.subr.mxu0 0.0
        %476 = vmatpush1.msra.mxu0 %v344
        %477 = vmatprep.subr.mxu0 0.0
        %478 = vmatpush1.msra.mxu0 0.0
        %479 = vmatprep.subr.mxu0 0.0
        %480 = vmatpush1.msra.mxu0 0.0
        %481 = vmatprep.subr.mxu0 0.0
        %482 = vmatpush1.msra.mxu0 0.0
        %483 = vmatprep.subr.mxu0 0.0
        %484 = vmatpush1.msra.mxu0 0.0
        %485 = vmatprep.subr.mxu0 0.0
        %486 = vmatpush1.msra.mxu0 0.0
        %487 = vmatprep.subr.mxu0 0.0
        %488 = vmatpush1.msra.mxu0 0.0
        %489 = vmatprep.subr.mxu0 0.0
        %490 = vmatpush1.msra.mxu0 0.0
        %491 = vmatprep.subr.mxu0 0.0
        %492 = vmatpush1.msra.mxu0 0.0
        %493 = vmatprep.subr.mxu0 0.0
        %494 = vmatpush1.msra.mxu0 0.0
        %495 = vmatprep.subr.mxu0 0.0
        %496 = vmatpush1.msra.mxu0 0.0
        %497 = vmatprep.subr.mxu0 0.0
        %498 = vmatpush1.msra.mxu0 0.0
        %499 = vmatprep.subr.mxu0 0.0
        %500 = vmatpush1.msra.mxu0 0.0
        %501 = vmatprep.subr.mxu0 0.0
        %502 = vmatpush1.msra.mxu0 0.0
        %503 = vmatprep.subr.mxu0 0.0
        %504 = vmatpush1.msra.mxu0 0.0
        %505 = vmatprep.subr.mxu0 0.0
        %506 = vmatpush1.msra.mxu0 0.0
        %507 = vmatprep.subr.mxu0 0.0
        %508 = vmatpush1.msra.mxu0 0.0
        %509 = vmatprep.subr.mxu0 0.0
        %510 = vmatpush1.msra.mxu0 0.0
        %511 = vmatprep.subr.mxu0 0.0
        %512 = vmatpush1.msra.mxu0 0.0
        %513 = vmatprep.subr.mxu0 0.0
        %514 = vmatpush1.msra.mxu0 0.0
        %515 = vmatprep.subr.mxu0 0.0
        %516 = vmatpush1.msra.mxu0 0.0
        %517 = vmatprep.subr.mxu0 0.0
        %518 = vmatpush1.msra.mxu0 0.0
        %519 = vmatprep.subr.mxu0 0.0
        %520 = vmatpush1.msra.mxu0 0.0
        %521 = vmatprep.subr.mxu0 0.0
        %522 = vmatpush1.msra.mxu0 0.0
        %523 = vmatprep.subr.mxu0 0.0
        %524 = vmatpush1.msra.mxu0 0.0
        %525 = vmatprep.subr.mxu0 0.0
        %526 = vmatpush1.msra.mxu0 0.0
        %527 = vmatprep.subr.mxu0 0.0
        %528 = vmatpush1.msra.mxu0 0.0
        %529 = vmatprep.subr.mxu0 0.0
        %530 = vmatpush1.msra.mxu0 0.0
        %531 = vmatprep.subr.mxu0 0.0
        %532 = vmatpush1.msra.mxu0 0.0
        %533 = vmatprep.mubr.f32.mxu0 0.0
        %534 = vmatmul.mubr.f32.gmra.mrb[0].mxu0 %v465
        %v535 = vpop.f32.mrb[0].mxu0
        %v536 = vadd.f32 %v458, %v535
        %v537 = vpop.f32.mrb[0].mxu0
        %538 = vmatprep.mubr.f32.mxu0 0.0
        %539 = vmatmul.mubr.f32.gmra.mrb[0].mxu0 %v467
        %v540 = vpop.f32.mrb[0].mxu0
        %v541 = vadd.f32 %v463, %v540
        %v542 = vpop.f32.mrb[0].mxu0
        %543 = vdwg.mxu0
        %v544 = vsub.f32 %v453, %v536
        %v545 = vsub.f32 %v454, %v541
        %v546 = vmul.f32 %v544, 0.5
        %v547 = vmul.f32 %v545, 0.5
        %v548 = vadd.f32 %v536, %v546
        %v549 = vadd.f32 %v541, %v547
        %551 = vset.pattern.permute.xlu0 32
        %552 = vperm.xlu0 %551, %v179
        %v553 = vpop.permute.xlu0 %552
        %vm555 = vcmask 130048
        %v556 = vsel %vm555, %v179, 0
        %558 = vmatprep.subr.mxu0 0.0
        %559 = vmatpush1.msra.mxu0 %v548
        %560 = vmatprep.subr.mxu0 0.0
        %561 = vmatpush1.msra.mxu0 %v549
        %562 = vmatprep.subr.mxu0 0.0
        %563 = vmatpush1.msra.mxu0 0.0
        %564 = vmatprep.subr.mxu0 0.0
        %565 = vmatpush1.msra.mxu0 0.0
        %566 = vmatprep.subr.mxu0 0.0
        %567 = vmatpush1.msra.mxu0 0.0
        %568 = vmatprep.subr.mxu0 0.0
        %569 = vmatpush1.msra.mxu0 0.0
        %570 = vmatprep.subr.mxu0 0.0
        %571 = vmatpush1.msra.mxu0 0.0
        %572 = vmatprep.subr.mxu0 0.0
        %573 = vmatpush1.msra.mxu0 0.0
        %574 = vmatprep.subr.mxu0 0.0
        %575 = vmatpush1.msra.mxu0 0.0
        %576 = vmatprep.subr.mxu0 0.0
        %577 = vmatpush1.msra.mxu0 0.0
        %578 = vmatprep.subr.mxu0 0.0
        %579 = vmatpush1.msra.mxu0 0.0
        %580 = vmatprep.subr.mxu0 0.0
        %581 = vmatpush1.msra.mxu0 0.0
        %582 = vmatprep.subr.mxu0 0.0
        %583 = vmatpush1.msra.mxu0 0.0
        %584 = vmatprep.subr.mxu0 0.0
        %585 = vmatpush1.msra.mxu0 0.0
        %586 = vmatprep.subr.mxu0 0.0
        %587 = vmatpush1.msra.mxu0 0.0
        %588 = vmatprep.subr.mxu0 0.0
        %589 = vmatpush1.msra.mxu0 0.0
        %590 = vmatprep.subr.mxu0 0.0
        %591 = vmatpush1.msra.mxu0 0.0
        %592 = vmatprep.subr.mxu0 0.0
        %593 = vmatpush1.msra.mxu0 0.0
        %594 = vmatprep.subr.mxu0 0.0
        %595 = vmatpush1.msra.mxu0 0.0
        %596 = vmatprep.subr.mxu0 0.0
        %597 = vmatpush1.msra.mxu0 0.0
        %598 = vmatprep.subr.mxu0 0.0
        %599 = vmatpush1.msra.mxu0 0.0
        %600 = vmatprep.subr.mxu0 0.0
        %601 = vmatpush1.msra.mxu0 0.0
        %602 = vmatprep.subr.mxu0 0.0
        %603 = vmatpush1.msra.mxu0 0.0
        %604 = vmatprep.subr.mxu0 0.0
        %605 = vmatpush1.msra.mxu0 0.0
        %606 = vmatprep.subr.mxu0 0.0
        %607 = vmatpush1.msra.mxu0 0.0
        %608 = vmatprep.subr.mxu0 0.0
        %609 = vmatpush1.msra.mxu0 0.0
        %610 = vmatprep.subr.mxu0 0.0
        %611 = vmatpush1.msra.mxu0 0.0
        %612 = vmatprep.subr.mxu0 0.0
        %613 = vmatpush1.msra.mxu0 0.0
        %614 = vmatprep.subr.mxu0 0.0
        %615 = vmatpush1.msra.mxu0 0.0
        %616 = vmatprep.subr.mxu0 0.0
        %617 = vmatpush1.msra.mxu0 0.0
        %618 = vmatprep.subr.mxu0 0.0
        %619 = vmatpush1.msra.mxu0 0.0
        %620 = vmatprep.subr.mxu0 0.0
        %621 = vmatpush1.msra.mxu0 0.0
        %622 = vmatprep.mubr.f32.mxu0 0.0
        %623 = vmatmul.mubr.f32.gmra.mrb[0].mxu0 %v556
        %v624 = vpop.f32.mrb[0].mxu0
        %v625 = vadd.f32 %v553, %v624
        %v626 = vpop.f32.mrb[0].mxu0
        %627 = vdwg.mxu0
        %v628 = vmax.f32 %v625, 0.0
        %630 = vset.pattern.permute.xlu0 32
        %631 = vperm.xlu0 %630, %v180
        %v632 = vpop.permute.xlu0 %631
        %v634 = vsel %vm555, %v180, 0
        %636 = vmatprep.subr.mxu0 0.0
        %637 = vmatpush1.msra.mxu0 %v536
        %638 = vmatprep.subr.mxu0 0.0
        %639 = vmatpush1.msra.mxu0 %v541
        %640 = vmatprep.subr.mxu0 0.0
        %641 = vmatpush1.msra.mxu0 0.0
        %642 = vmatprep.subr.mxu0 0.0
        %643 = vmatpush1.msra.mxu0 0.0
        %644 = vmatprep.subr.mxu0 0.0
        %645 = vmatpush1.msra.mxu0 0.0
        %646 = vmatprep.subr.mxu0 0.0
        %647 = vmatpush1.msra.mxu0 0.0
        %648 = vmatprep.subr.mxu0 0.0
        %649 = vmatpush1.msra.mxu0 0.0
        %650 = vmatprep.subr.mxu0 0.0
        %651 = vmatpush1.msra.mxu0 0.0
        %652 = vmatprep.subr.mxu0 0.0
        %653 = vmatpush1.msra.mxu0 0.0
        %654 = vmatprep.subr.mxu0 0.0
        %655 = vmatpush1.msra.mxu0 0.0
        %656 = vmatprep.subr.mxu0 0.0
        %657 = vmatpush1.msra.mxu0 0.0
        %658 = vmatprep.subr.mxu0 0.0
        %659 = vmatpush1.msra.mxu0 0.0
        %660 = vmatprep.subr.mxu0 0.0
        %661 = vmatpush1.msra.mxu0 0.0
        %662 = vmatprep.subr.mxu0 0.0
        %663 = vmatpush1.msra.mxu0 0.0
        %664 = vmatprep.subr.mxu0 0.0
        %665 = vmatpush1.msra.mxu0 0.0
        %666 = vmatprep.subr.mxu0 0.0
        %667 = vmatpush1.msra.mxu0 0.0
        %668 = vmatprep.subr.mxu0 0.0
        %669 = vmatpush1.msra.mxu0 0.0
        %670 = vmatprep.subr.mxu0 0.0
        %671 = vmatpush1.msra.mxu0 0.0
        %672 = vmatprep.subr.mxu0 0.0
        %673 = vmatpush1.msra.mxu0 0.0
        %674 = vmatprep.subr.mxu0 0.0
        %675 = vmatpush1.msra.mxu0 0.0
        %676 = vmatprep.subr.mxu0 0.0
        %677 = vmatpush1.msra.mxu0 0.0
        %678 = vmatprep.subr.mxu0 0.0
        %679 = vmatpush1.msra.mxu0 0.0
        %680 = vmatprep.subr.mxu0 0.0
        %681 = vmatpush1.msra.mxu0 0.0
        %682 = vmatprep.subr.mxu0 0.0
        %683 = vmatpush1.msra.mxu0 0.0
        %684 = vmatprep.subr.mxu0 0.0
        %685 = vmatpush1.msra.mxu0 0.0
        %686 = vmatprep.subr.mxu0 0.0
        %687 = vmatpush1.msra.mxu0 0.0
        %688 = vmatprep.subr.mxu0 0.0
        %689 = vmatpush1.msra.mxu0 0.0
        %690 = vmatprep.subr.mxu0 0.0
        %691 = vmatpush1.msra.mxu0 0.0
        %692 = vmatprep.subr.mxu0 0.0
        %693 = vmatpush1.msra.mxu0 0.0
        %694 = vmatprep.subr.mxu0 0.0
        %695 = vmatpush1.msra.mxu0 0.0
        %696 = vmatprep.subr.mxu0 0.0
        %697 = vmatpush1.msra.mxu0 0.0
        %698 = vmatprep.subr.mxu0 0.0
        %699 = vmatpush1.msra.mxu0 0.0
        %700 = vmatprep.mubr.f32.mxu0 0.0
        %701 = vmatmul.mubr.f32.gmra.mrb[0].mxu0 %v634
        %v702 = vpop.f32.mrb[0].mxu0
        %v703 = vadd.f32 %v632, %v702
        %v704 = vpop.f32.mrb[0].mxu0
        %705 = vdwg.mxu0
        %v706 = vsub.f32 %v628, %v703
        %v707 = vmul.f32 %v706, 0.5
        %v708 = vadd.f32 %v703, %v707
        %p709 = scmp.eq.s32.totalorder %s18, 0
        %p710 = scmp.eq.s32.totalorder %s19, 0
        %p711 = pnand %p709, %p710
        %p712 = pneg %p711
        // Predicated region
        $region33: #{treenn_forward.1} parent=27 // pred_check
          _
        $region34: #{treenn_forward.1} parent=27 // pred_check_branch
          %714 = sbr.rel (%p711) target = $region36
        $region35: #{treenn_forward.1} parent=27 // pred_region
          %vm715 = vcmask 7168
          %716 = vst.msk [vmem:[#allocation2] sm:$0xff] %vm715, 0.0
          %717 = vst.msk [vmem:[#allocation3] sm:$0xff] %vm715, 0.0
        $region36: #{treenn_forward.1} parent=27 // pred_fallthru
          _
        // Predicated region
        $region37: #{treenn_forward.1} parent=27 // pred_check
          %p718 = pneg %p709
        $region38: #{treenn_forward.1} parent=27 // pred_check_branch
          %720 = sbr.rel (%p718) target = $region40
        $region39: #{treenn_forward.1} parent=27 // pred_region
          %v721 = vlaneseq
          %v722 = vand.u32 %v721, 127
          %s723 = smul.u32 %s19, 128
          %v724 = vstv %s723
          %v725 = vadd.s32 %v722, %v724
          %vm726 = vcmp.lt.s32.totalorder %v725, 200
          %v727 = vsel %vm726, %v708, 0.0
          %v728 = vld [vmem:[#allocation2] sm:$0xff]
          %729 = vadd.xlane.f32.xlu0 %v727
          %v730 = vpop.xlane.xlu0 %729
          %v731 = vadd.f32 %v728, %v730
          %vm732 = vcmask 7168
          %733 = vst.msk [vmem:[#allocation2] sm:$0xff] %vm732, %v731
          %v734 = vld [vmem:[#allocation3] sm:$0xff]
          %v735 = vmul.f32 %v727, %v708
          %736 = vadd.xlane.f32.xlu0 %v735
          %v737 = vpop.xlane.xlu0 %736
          %v738 = vadd.f32 %v734, %v737
          %739 = vst.msk [vmem:[#allocation3] sm:$0xff] %vm732, %v738
        $region40: #{treenn_forward.1} parent=27 // pred_fallthru
          _
        %p740 = scmp.eq.s32.totalorder %s18, 1
        // Predicated region
        $region41: #{treenn_forward.1} parent=27 // pred_check
          %p741 = pneg %p740
        $region42: #{treenn_forward.1} parent=27 // pred_check_branch
          %743 = sbr.rel (%p741) target = $region44
        $region43: #{treenn_forward.1} parent=27 // pred_region
          %v744 = vld [vmem:[#allocation4 + $0x60] sm:$0xff]
          %v745 = vld [vmem:[#allocation4 + $0x70] sm:$0x7]
          %v746 = vld [vmem:[#allocation4 + $0x78] sm:$0xff]
          %v747 = vld [vmem:[#allocation2] sm:$0xff]
          %v748 = vmul.f32 %v747, 0.005
          %v749 = vld [vmem:[#allocation3] sm:$0xff]
          %v750 = vmul.f32 %v749, 0.005
          %v751 = vmul.f32 %v748, %v748
          %v752 = vsub.f32 %v750, %v751
          %v753 = vadd.f32 %v752, 1e-05
          %v754 = vrsqrt.pop %v753
          %756 = vrot.lane.b32.xlu0 %v754, 33
          %v757 = vpop.permute.xlu0 %756
          %v759 = vmul.f32 %v744, %v757
          %761 = vset.pattern.permute.xlu0 33
          %762 = vperm.xlu0 %761, %v759
          %v763 = vpop.permute.xlu0 %762
          %v765 = vmul.f32 %v746, %v763
          %vm766 = vcmask 64512
          %v768 = vsel %vm766, %v745, 0
          %770 = vmatprep.subr.mxu0 0.0
          %771 = vmatpush1.msra.mxu0 %v765
          %772 = vmatprep.subr.mxu0 0.0
          %773 = vmatpush1.msra.mxu0 0.0
          %774 = vmatprep.subr.mxu0 0.0
          %775 = vmatpush1.msra.mxu0 0.0
          %776 = vmatprep.subr.mxu0 0.0
          %777 = vmatpush1.msra.mxu0 0.0
          %778 = vmatprep.subr.mxu0 0.0
          %779 = vmatpush1.msra.mxu0 0.0
          %780 = vmatprep.subr.mxu0 0.0
          %781 = vmatpush1.msra.mxu0 0.0
          %782 = vmatprep.subr.mxu0 0.0
          %783 = vmatpush1.msra.mxu0 0.0
          %784 = vmatprep.subr.mxu0 0.0
          %785 = vmatpush1.msra.mxu0 0.0
          %786 = vmatprep.subr.mxu0 0.0
          %787 = vmatpush1.msra.mxu0 0.0
          %788 = vmatprep.subr.mxu0 0.0
          %789 = vmatpush1.msra.mxu0 0.0
          %790 = vmatprep.subr.mxu0 0.0
          %791 = vmatpush1.msra.mxu0 0.0
          %792 = vmatprep.subr.mxu0 0.0
          %793 = vmatpush1.msra.mxu0 0.0
          %794 = vmatprep.subr.mxu0 0.0
          %795 = vmatpush1.msra.mxu0 0.0
          %796 = vmatprep.subr.mxu0 0.0
          %797 = vmatpush1.msra.mxu0 0.0
          %798 = vmatprep.subr.mxu0 0.0
          %799 = vmatpush1.msra.mxu0 0.0
          %800 = vmatprep.subr.mxu0 0.0
          %801 = vmatpush1.msra.mxu0 0.0
          %802 = vmatprep.subr.mxu0 0.0
          %803 = vmatpush1.msra.mxu0 0.0
          %804 = vmatprep.subr.mxu0 0.0
          %805 = vmatpush1.msra.mxu0 0.0
          %806 = vmatprep.subr.mxu0 0.0
          %807 = vmatpush1.msra.mxu0 0.0
          %808 = vmatprep.subr.mxu0 0.0
          %809 = vmatpush1.msra.mxu0 0.0
          %810 = vmatprep.subr.mxu0 0.0
          %811 = vmatpush1.msra.mxu0 0.0
          %812 = vmatprep.subr.mxu0 0.0
          %813 = vmatpush1.msra.mxu0 0.0
          %814 = vmatprep.subr.mxu0 0.0
          %815 = vmatpush1.msra.mxu0 0.0
          %816 = vmatprep.subr.mxu0 0.0
          %817 = vmatpush1.msra.mxu0 0.0
          %818 = vmatprep.subr.mxu0 0.0
          %819 = vmatpush1.msra.mxu0 0.0
          %820 = vmatprep.subr.mxu0 0.0
          %821 = vmatpush1.msra.mxu0 0.0
          %822 = vmatprep.subr.mxu0 0.0
          %823 = vmatpush1.msra.mxu0 0.0
          %824 = vmatprep.subr.mxu0 0.0
          %825 = vmatpush1.msra.mxu0 0.0
          %826 = vmatprep.subr.mxu0 0.0
          %827 = vmatpush1.msra.mxu0 0.0
          %828 = vmatprep.subr.mxu0 0.0
          %829 = vmatpush1.msra.mxu0 0.0
          %830 = vmatprep.subr.mxu0 0.0
          %831 = vmatpush1.msra.mxu0 0.0
          %832 = vmatprep.subr.mxu0 0.0
          %833 = vmatpush1.msra.mxu0 0.0
          %834 = vmatprep.mubr.f32.mxu0 0.0
          %835 = vmatmul.mubr.f32.gmra.mrb[0].mxu0 %v768
          %v836 = vpop.f32.mrb[0].mxu0
          %v837 = vadd.f32 0.0, %v836
          %v838 = vpop.f32.mrb[0].mxu0
          %839 = vdwg.mxu0
          %840 = vrot.lane.b32.xlu0 %v759, 95
          %v841 = vpop.permute.xlu0 %840
          %v843 = vmul.f32 %v748, %v841
          %845 = vrot.lane.b32.xlu0 %v843, 34
          %v846 = vpop.permute.xlu0 %845
          %v848 = vsub.f32 %v744, %v846
          %850 = vrot.lane.b32.xlu0 %v848, 94
          %v851 = vpop.permute.xlu0 %850
          %853 = vrot.lane.b32.xlu0 %v745, 96
          %v854 = vpop.permute.xlu0 %853
          %856 = vmatprep.subr.mxu0 0.0
          %857 = vmatpush1.msra.mxu0 %v851
          %858 = vmatprep.subr.mxu0 0.0
          %859 = vmatpush1.msra.mxu0 0.0
          %860 = vmatprep.subr.mxu0 0.0
          %861 = vmatpush1.msra.mxu0 0.0
          %862 = vmatprep.subr.mxu0 0.0
          %863 = vmatpush1.msra.mxu0 0.0
          %864 = vmatprep.subr.mxu0 0.0
          %865 = vmatpush1.msra.mxu0 0.0
          %866 = vmatprep.subr.mxu0 0.0
          %867 = vmatpush1.msra.mxu0 0.0
          %868 = vmatprep.subr.mxu0 0.0
          %869 = vmatpush1.msra.mxu0 0.0
          %870 = vmatprep.subr.mxu0 0.0
          %871 = vmatpush1.msra.mxu0 0.0
          %872 = vmatprep.subr.mxu0 0.0
          %873 = vmatpush1.msra.mxu0 0.0
          %874 = vmatprep.subr.mxu0 0.0
          %875 = vmatpush1.msra.mxu0 0.0
          %876 = vmatprep.subr.mxu0 0.0
          %877 = vmatpush1.msra.mxu0 0.0
          %878 = vmatprep.subr.mxu0 0.0
          %879 = vmatpush1.msra.mxu0 0.0
          %880 = vmatprep.subr.mxu0 0.0
          %881 = vmatpush1.msra.mxu0 0.0
          %882 = vmatprep.subr.mxu0 0.0
          %883 = vmatpush1.msra.mxu0 0.0
          %884 = vmatprep.subr.mxu0 0.0
          %885 = vmatpush1.msra.mxu0 0.0
          %886 = vmatprep.subr.mxu0 0.0
          %887 = vmatpush1.msra.mxu0 0.0
          %888 = vmatprep.subr.mxu0 0.0
          %889 = vmatpush1.msra.mxu0 0.0
          %890 = vmatprep.subr.mxu0 0.0
          %891 = vmatpush1.msra.mxu0 0.0
          %892 = vmatprep.subr.mxu0 0.0
          %893 = vmatpush1.msra.mxu0 0.0
          %894 = vmatprep.subr.mxu0 0.0
          %895 = vmatpush1.msra.mxu0 0.0
          %896 = vmatprep.subr.mxu0 0.0
          %897 = vmatpush1.msra.mxu0 0.0
          %898 = vmatprep.subr.mxu0 0.0
          %899 = vmatpush1.msra.mxu0 0.0
          %900 = vmatprep.subr.mxu0 0.0
          %901 = vmatpush1.msra.mxu0 0.0
          %902 = vmatprep.subr.mxu0 0.0
          %903 = vmatpush1.msra.mxu0 0.0
          %904 = vmatprep.subr.mxu0 0.0
          %905 = vmatpush1.msra.mxu0 0.0
          %906 = vmatprep.subr.mxu0 0.0
          %907 = vmatpush1.msra.mxu0 0.0
          %908 = vmatprep.subr.mxu0 0.0
          %909 = vmatpush1.msra.mxu0 0.0
          %910 = vmatprep.subr.mxu0 0.0
          %911 = vmatpush1.msra.mxu0 0.0
          %912 = vmatprep.subr.mxu0 0.0
          %913 = vmatpush1.msra.mxu0 0.0
          %914 = vmatprep.subr.mxu0 0.0
          %915 = vmatpush1.msra.mxu0 0.0
          %916 = vmatprep.subr.mxu0 0.0
          %917 = vmatpush1.msra.mxu0 0.0
          %918 = vmatprep.subr.mxu0 0.0
          %919 = vmatpush1.msra.mxu0 0.0
          %920 = vmatprep.mubr.f32.mxu0 0.0
          %921 = vmatmul.mubr.f32.gmra.mrb[0].mxu0 %v768
          %v922 = vpop.f32.mrb[0].mxu0
          %v923 = vadd.f32 %v854, %v922
          %v924 = vpop.f32.mrb[0].mxu0
          %925 = vdwg.mxu0
          %927 = vset.pattern.permute.xlu0 0
          %928 = vperm.xlu0 %927, %v923
          %v929 = vpop.permute.xlu0 %928
          %v932 = vsel %vm766, %v837, 0
          %934 = vmatprep.subr.mxu0 0.0
          %935 = vmatpush1.msra.mxu0 %v708
          %936 = vmatprep.subr.mxu0 0.0
          %937 = vmatpush1.msra.mxu0 0.0
          %938 = vmatprep.subr.mxu0 0.0
          %939 = vmatpush1.msra.mxu0 0.0
          %940 = vmatprep.subr.mxu0 0.0
          %941 = vmatpush1.msra.mxu0 0.0
          %942 = vmatprep.subr.mxu0 0.0
          %943 = vmatpush1.msra.mxu0 0.0
          %944 = vmatprep.subr.mxu0 0.0
          %945 = vmatpush1.msra.mxu0 0.0
          %946 = vmatprep.subr.mxu0 0.0
          %947 = vmatpush1.msra.mxu0 0.0
          %948 = vmatprep.subr.mxu0 0.0
          %949 = vmatpush1.msra.mxu0 0.0
          %950 = vmatprep.subr.mxu0 0.0
          %951 = vmatpush1.msra.mxu0 0.0
          %952 = vmatprep.subr.mxu0 0.0
          %953 = vmatpush1.msra.mxu0 0.0
          %954 = vmatprep.subr.mxu0 0.0
          %955 = vmatpush1.msra.mxu0 0.0
          %956 = vmatprep.subr.mxu0 0.0
          %957 = vmatpush1.msra.mxu0 0.0
          %958 = vmatprep.subr.mxu0 0.0
          %959 = vmatpush1.msra.mxu0 0.0
          %960 = vmatprep.subr.mxu0 0.0
          %961 = vmatpush1.msra.mxu0 0.0
          %962 = vmatprep.subr.mxu0 0.0
          %963 = vmatpush1.msra.mxu0 0.0
          %964 = vmatprep.subr.mxu0 0.0
          %965 = vmatpush1.msra.mxu0 0.0
          %966 = vmatprep.subr.mxu0 0.0
          %967 = vmatpush1.msra.mxu0 0.0
          %968 = vmatprep.subr.mxu0 0.0
          %969 = vmatpush1.msra.mxu0 0.0
          %970 = vmatprep.subr.mxu0 0.0
          %971 = vmatpush1.msra.mxu0 0.0
          %972 = vmatprep.subr.mxu0 0.0
          %973 = vmatpush1.msra.mxu0 0.0
          %974 = vmatprep.subr.mxu0 0.0
          %975 = vmatpush1.msra.mxu0 0.0
          %976 = vmatprep.subr.mxu0 0.0
          %977 = vmatpush1.msra.mxu0 0.0
          %978 = vmatprep.subr.mxu0 0.0
          %979 = vmatpush1.msra.mxu0 0.0
          %980 = vmatprep.subr.mxu0 0.0
          %981 = vmatpush1.msra.mxu0 0.0
          %982 = vmatprep.subr.mxu0 0.0
          %983 = vmatpush1.msra.mxu0 0.0
          %984 = vmatprep.subr.mxu0 0.0
          %985 = vmatpush1.msra.mxu0 0.0
          %986 = vmatprep.subr.mxu0 0.0
          %987 = vmatpush1.msra.mxu0 0.0
          %988 = vmatprep.subr.mxu0 0.0
          %989 = vmatpush1.msra.mxu0 0.0
          %990 = vmatprep.subr.mxu0 0.0
          %991 = vmatpush1.msra.mxu0 0.0
          %992 = vmatprep.subr.mxu0 0.0
          %993 = vmatpush1.msra.mxu0 0.0
          %994 = vmatprep.subr.mxu0 0.0
          %995 = vmatpush1.msra.mxu0 0.0
          %996 = vmatprep.subr.mxu0 0.0
          %997 = vmatpush1.msra.mxu0 0.0
          %998 = vmatprep.mubr.f32.mxu0 0.0
          %999 = vmatmul.mubr.f32.gmra.mrb[0].mxu0 %v932
          %v1000 = vpop.f32.mrb[0].mxu0
          %v1001 = vadd.f32 %v929, %v1000
          %v1002 = vpop.f32.mrb[0].mxu0
          %1003 = vdwg.mxu0
          %1004 = vst [vmem:[%s165] sm:$0x7] %v1001
        $region44: #{treenn_forward.1} parent=27 // pred_fallthru
          _
        %p1005 = scmp.lt.s32.totalorder %s19, 1
        %s1006 = scalar_select %p1005, %s19, 1
        %s1007 = smul.addr %s1006, 4
        %s1008 = scalar_lea.vmem %s2, %s1007
        // Predicated region
        $region45: #{treenn_forward.1} parent=27 // pred_check
          %p1009 = pneg %p91
        $region46: #{treenn_forward.1} parent=27 // pred_check_branch
          %1011 = sbr.rel (%p1009) target = $region48
        $region47: #{treenn_forward.1} parent=27 // pred_region
          _
        $region48: #{treenn_forward.1} parent=27 // pred_fallthru
          _
      $region28: #{treenn_forward.1} parent=5 // pred_fallthru
        _
      %p1012 = scmp.le.s32.totalorder 2, %s9
      // Predicated region
      $region49: #{treenn_forward.1} parent=5 // pred_check
        %p1013 = pneg %p1012
      $region50: #{treenn_forward.1} parent=5 // pred_check_branch
        %1015 = sbr.rel (%p1013) target = $region52
      $region51: #{treenn_forward.1} parent=5 // pred_region
        %s1016 = ssub.s32 %s9, 2
        // Predicated region
        $region53: #{treenn_forward.1} parent=51 // pred_check
          %p1017 = pneg %p97
        $region54: #{treenn_forward.1} parent=51 // pred_check_branch
          %1019 = sbr.rel (%p1017) target = $region56
        $region55: #{treenn_forward.1} parent=51 // pred_region
          %p1020 = scmp.lt.s32.totalorder %s21, 1
          %s1021 = scalar_select %p1020, %s21, 1
          %s1022 = smul.addr %s1021, 4
          %s1023 = scalar_lea.vmem %s2, %s1022
        $region56: #{treenn_forward.1} parent=51 // pred_fallthru
          _
      $region52: #{treenn_forward.1} parent=5 // pred_fallthru
        _
    $region6: #{treenn_forward.1} parent=1 // loop_footer
      %s13 = sadd.s32 1, %s9
    $region7: #{treenn_forward.1} parent=1 // loop_footer_branch
      %8 = sbr.rel target = $region3
    $region8: #{treenn_forward.1} parent=1 // loop_exit
      _
    %1024 = vsyncpa [#allocation5], 1
    %s1025 = scalar_lea.sflag [#allocation5], 1
    %1026 = vsyncpa %s1025, 1

</llo_original>
